<compile_context>
chip_gen: v6e
topology: v6e:2x2x1
jax: 0.10.0
libtpu: 0.0.40
codegen_flags: <defaults>
</compile_context>

<pallas_src>
import functools

import jax
import jax.numpy as jnp
from jax import lax
from jax.experimental import pallas as pl
from jax.experimental.pallas import tpu as pltpu

_LANE = 128            # lane width
_MAX_TILE_ROWS = 2048  # (2048,128) f32 = 1 MiB per pipeline buffer


def _round_up(x, m):
    return (x + m - 1) // m * m


def _prep(x):
    """Flatten to a lane-major (rows, 128) slab in the *native* dtype.

    Only the ragged sub-lane tail (< 128 elements) is ever padded; padded /
    out-of-bounds elements are masked to zero inside the kernel, so no
    full-array copy or neutral-value trick is needed.
    """
    n = int(x.size)
    xf = jnp.ravel(x)
    pad = (-n) % _LANE
    if pad:
        xf = jnp.concatenate([xf, jnp.zeros((pad,), dtype=xf.dtype)])
    rows = xf.shape[0] // _LANE
    return xf.reshape(rows, _LANE), rows, n


def _tile_rows(rows):
    return min(_MAX_TILE_ROWS, _round_up(max(rows, 1), 8))


def _flat_mask(i, tile_rows, n):
    """mask[r, l] = (global flat index < n) for the current tile."""
    row_ids = lax.broadcasted_iota(jnp.int32, (tile_rows, _LANE), 0)
    lane_ids = lax.broadcasted_iota(jnp.int32, (tile_rows, _LANE), 1)
    flat = (i * tile_rows + row_ids) * _LANE + lane_ids
    return flat < n


def _fused_kernel(n, tile_rows, real_ref, fake_ref, o_ref):
    i = pl.program_id(0)
    mask = _flat_mask(i, tile_rows, n)
    r = real_ref[...].astype(jnp.float32)
    f = fake_ref[...].astype(jnp.float32)
    v = jnp.maximum(1.0 - r, 0.0) + jnp.maximum(1.0 + f, 0.0)
    v = jnp.where(mask, v, 0.0)
    # VPU-only partial: add the (tile_rows//8) vreg tiles together -> (1,8,128)
    o_ref[...] = jnp.sum(v.reshape(-1, 8, _LANE), axis=0, keepdims=True)


def _single_kernel(n, tile_rows, sign, x_ref, o_ref):
    i = pl.program_id(0)
    mask = _flat_mask(i, tile_rows, n)
    x = x_ref[...].astype(jnp.float32)
    v = jnp.maximum(1.0 + sign * x, 0.0)
    v = jnp.where(mask, v, 0.0)
    o_ref[...] = jnp.sum(v.reshape(-1, 8, _LANE), axis=0, keepdims=True)


def _fused_hinge_loss(real, fake):
    """mean(relu(1-real)) + mean(relu(1+fake)) when real.size == fake.size."""
    r2, rows, n = _prep(real)
    f2, rows_f, n_f = _prep(fake)
    assert rows == rows_f and n == n_f
    tr = _tile_rows(rows)
    nb = pl.cdiv(rows, tr)

    partials = pl.pallas_call(
        functools.partial(_fused_kernel, n, tr),
        out_shape=jax.ShapeDtypeStruct((nb, 8, _LANE), jnp.float32),
        grid=(nb,),
        in_specs=[pl.BlockSpec((tr, _LANE), lambda i: (i, 0)),
                  pl.BlockSpec((tr, _LANE), lambda i: (i, 0))],
        out_specs=pl.BlockSpec((1, 8, _LANE), lambda i: (i, 0, 0)),
        compiler_params=pltpu.CompilerParams(
            dimension_semantics=("parallel",)),
    )(r2, f2)
    # n_real == n_fake => mean1 + mean2 == (sum1 + sum2) / n
    return jnp.sum(partials) * (1.0 / float(n))


def _hinge_mean(x, sign):
    """mean(relu(1 + sign*x)) for a single tensor (fallback path)."""
    if int(x.size) == 0:
        return jnp.float32(jnp.nan)  # matches torch.mean of an empty tensor
    x2, rows, n = _prep(x)
    tr = _tile_rows(rows)
    nb = pl.cdiv(rows, tr)

    partials = pl.pallas_call(
        functools.partial(_single_kernel, n, tr, float(sign)),
        out_shape=jax.ShapeDtypeStruct((nb, 8, _LANE), jnp.float32),
        grid=(nb,),
        in_specs=[pl.BlockSpec((tr, _LANE), lambda i: (i, 0))],
        out_specs=pl.BlockSpec((1, 8, _LANE), lambda i: (i, 0, 0)),
        compiler_params=pltpu.CompilerParams(
            dimension_semantics=("parallel",)),
    )(x2)
    return jnp.sum(partials) * (1.0 / float(n))


def d_criterion_adv(real_labels, fake_labels, mode="hinge"):
    """JAX/Pallas equivalent of D_Criterion_adv.forward (hinge mode)."""
    if mode != "hinge":
        raise ValueError("only 'hinge' mode is supported")
    n_r, n_f = int(real_labels.size), int(fake_labels.size)
    if n_r and n_r == n_f:
        return _fused_hinge_loss(real_labels, fake_labels)
    # Mismatched element counts (rare): two single-input passes.
    return _hinge_mean(real_labels, -1.0) + _hinge_mean(fake_labels, 1.0)


def _ref_loss(real, fake):
    return (jnp.mean(jnp.maximum(1.0 - real.astype(jnp.float32), 0.0))
            + jnp.mean(jnp.maximum(1.0 + fake.astype(jnp.float32), 0.0)))


if __name__ == "__main__":
    key = jax.random.PRNGKey(0)
    k_real, k_fake, k_r2, k_f2 = jax.random.split(key, 4)

    # Small patch-GAN style discriminator outputs (N, C, H, W) — fused path.
    real_labels = jax.random.normal(k_real, (2, 1, 16, 16), dtype=jnp.float32)
    fake_labels = jax.random.normal(k_fake, (2, 1, 16, 16), dtype=jnp.float32)

    loss = d_criterion_adv(real_labels, fake_labels)
    loss = jax.block_until_ready(loss)
    ref = _ref_loss(real_labels, fake_labels)
    assert jnp.allclose(loss, ref, rtol=1e-5, atol=1e-6), (loss, ref)

    # Ragged / mismatched shapes — exercises lane padding, in-kernel masking
    # and the non-fused fallback path.
    real_r = jax.random.normal(k_r2, (2, 3, 7, 5), dtype=jnp.float32)   # 210 elems
    fake_r = jax.random.normal(k_f2, (2, 1, 16, 16), dtype=jnp.float32)  # 512 elems
    loss_r = jax.block_until_ready(d_criterion_adv(real_r, fake_r))
    ref_r = _ref_loss(real_r, fake_r)
    assert jnp.allclose(loss_r, ref_r, rtol=1e-5, atol=1e-6), (loss_r, ref_r)

    print("KERNEL_OK")
</pallas_src>

<mosaic_0001>
module attributes {stable_mosaic.version = 11 : i64} {
  func.func @_fused_kernel(%arg0: i32, %arg1: memref<8x128xf32, #tpu.memory_space<vmem>>, %arg2: memref<8x128xf32, #tpu.memory_space<vmem>>, %arg3: memref<1x8x128xf32, #tpu.memory_space<vmem>>) attributes {dimension_semantics = [#tpu.dimension_semantics<parallel>], iteration_bounds = array<i64: 1>, scalar_prefetch = 0 : i64, scratch_operands = 0 : i64, tpu.core_type = #tpu.core_type<tc>, window_params = [{transform_indices = @transform_0, window_bounds = array<i64: 8, 128>}, {transform_indices = @transform_1, window_bounds = array<i64: 8, 128>}, {transform_indices = @transform_2, window_bounds = array<i64: 1, 8, 128>}]} {
    %0 = tpu.iota {dimensions = array<i32: 0>} : vector<8x128xi32>
    %1 = tpu.iota {dimensions = array<i32: 1>} : vector<8x128xi32>
    %c8_i32 = arith.constant 8 : i32
    %2 = arith.muli %arg0, %c8_i32 : i32
    %3 = vector.broadcast %2 : i32 to vector<8x128xi32>
    %4 = arith.addi %3, %0 : vector<8x128xi32>
    %c128_i32 = arith.constant 128 : i32
    %5 = vector.broadcast %c128_i32 : i32 to vector<8x128xi32>
    %6 = arith.muli %4, %5 : vector<8x128xi32>
    %7 = arith.addi %6, %1 : vector<8x128xi32>
    %c512_i32 = arith.constant 512 : i32
    %8 = vector.broadcast %c512_i32 : i32 to vector<8x128xi32>
    %9 = arith.cmpi slt, %7, %8 : vector<8x128xi32>
    %c0 = arith.constant 0 : index
    %c0_0 = arith.constant 0 : index
    %10 = vector.load %arg1[%c0, %c0_0] : memref<8x128xf32, #tpu.memory_space<vmem>>, vector<8x128xf32>
    %c0_1 = arith.constant 0 : index
    %c0_2 = arith.constant 0 : index
    %11 = vector.load %arg2[%c0_1, %c0_2] : memref<8x128xf32, #tpu.memory_space<vmem>>, vector<8x128xf32>
    %cst = arith.constant 1.000000e+00 : f32
    %12 = vector.broadcast %cst : f32 to vector<8x128xf32>
    %13 = arith.subf %12, %10 : vector<8x128xf32>
    %cst_3 = arith.constant 0.000000e+00 : f32
    %14 = vector.broadcast %cst_3 : f32 to vector<8x128xf32>
    %15 = arith.maximumf %13, %14 : vector<8x128xf32>
    %cst_4 = arith.constant 1.000000e+00 : f32
    %16 = vector.broadcast %cst_4 : f32 to vector<8x128xf32>
    %17 = arith.addf %16, %11 : vector<8x128xf32>
    %cst_5 = arith.constant 0.000000e+00 : f32
    %18 = vector.broadcast %cst_5 : f32 to vector<8x128xf32>
    %19 = arith.maximumf %17, %18 : vector<8x128xf32>
    %20 = arith.addf %15, %19 : vector<8x128xf32>
    %cst_6 = arith.constant 0.000000e+00 : f32
    %21 = vector.broadcast %cst_6 : f32 to vector<8x128xf32>
    %22 = arith.select %9, %20, %21 : vector<8x128xi1>, vector<8x128xf32>
    %23 = vector.shape_cast %22 : vector<8x128xf32> to vector<1x8x128xf32>
    %cst_7 = arith.constant dense<0.000000e+00> : vector<8x128xf32>
    %24 = vector.multi_reduction <add>, %23, %cst_7 [0] : vector<1x8x128xf32> to vector<8x128xf32>
    %25 = vector.shape_cast %24 : vector<8x128xf32> to vector<1x8x128xf32>
    %c0_8 = arith.constant 0 : index
    %c0_9 = arith.constant 0 : index
    %c0_10 = arith.constant 0 : index
    %26 = vector.load %arg3[%c0_8, %c0_9, %c0_10] : memref<1x8x128xf32, #tpu.memory_space<vmem>>, vector<1x8x128xf32>
    tpu.vector_store %arg3[%c0_8, %c0_9, %c0_10], %25 {strides = array<i32>} : memref<1x8x128xf32, #tpu.memory_space<vmem>>, vector<1x8x128xf32>,
    return
  }
  func.func @transform_0(%arg0: i32) -> (i32, i32) {
    %c0_i32 = arith.constant 0 : i32
    %c0_i32_0 = arith.constant 0 : i32
    return %arg0, %c0_i32 : i32, i32
  }
  func.func @transform_1(%arg0: i32) -> (i32, i32) {
    %c0_i32 = arith.constant 0 : i32
    %c0_i32_0 = arith.constant 0 : i32
    return %arg0, %c0_i32 : i32, i32
  }
  func.func @transform_2(%arg0: i32) -> (i32, i32, i32) {
    %c0_i32 = arith.constant 0 : i32
    %c0_i32_0 = arith.constant 0 : i32
    %c0_i32_1 = arith.constant 0 : i32
    return %arg0, %c0_i32, %c0_i32_0 : i32, i32, i32
  }
}

</mosaic_0001>

<llo_original>
// kernel: tpu_custom_call.1
$region0: #{tpu_custom_call.1}
  #allocation0 [shape = 'u32[]', space=smem, size = 0x4, offset = 0x4, fixed_abs, tag = 'smem constant byte address 0x4 - core index']
  #allocation1 [shape = 'u32[144,128]{1,0:T(1,128)}', space=vmem, size = 0x12000, scoped, tag = 'internal scratch']
  %s0 = inlined_call_operand.hbm [shape: f32[4,128], index: 0, kind: input, shape index: {}]
  %s1 = inlined_call_operand.hbm [shape: f32[4,128], index: 1, kind: input, shape index: {}]
  %s2 = inlined_call_operand.hbm [shape: f32[1,8,128], index: 2, kind: output, shape index: {}]
  %s3 = sld [smem:[#allocation0]]
  $region26: #{tpu_custom_call.1} parent=0
    _
  %s5 = ssub.s32 1, %s3
  %s6 = scalar_select 0, %s5, %s3
  $region1: #{tpu_custom_call.1} parent=0
    #allocation2 [shape = 'u8[4096]{0}', space=vmem, size = 0x1000, scoped, tag = 'input window, operand 0, single buffered']
    #allocation3 [shape = 's32[1]{0}', space=sflag, size = 0x4, scoped, tag = 'scoped memory for tpu_custom_call.1']
    #allocation4 [shape = 's32[1]{0}', space=sflag, size = 0x4, scoped, tag = 'scoped memory for tpu_custom_call.1']
    #allocation5 [shape = 'u8[4096]{0}', space=vmem, size = 0x1000, scoped, tag = 'input window, operand 1, single buffered']
    #allocation6 [shape = 's32[1]{0}', space=sflag, size = 0x4, scoped, tag = 'scoped memory for tpu_custom_call.1']
    #allocation7 [shape = 'u8[4096]{0}', space=vmem, size = 0x1000, scoped, tag = 'output window, operand 0, single buffered']
    %7 = vsyncpa [#allocation3], 0
    %8 = vsyncpa [#allocation6], 0
    %9 = vsyncpa [#allocation4], 0
    // Predicated region
    $region2: #{tpu_custom_call.1} parent=1 // pred_check
      _
    $region3: #{tpu_custom_call.1} parent=1 // pred_check_branch
      %11 = sbr.rel (0) target = $region5
    $region4: #{tpu_custom_call.1} parent=1 // pred_region
      %s13 = ssub.s32 128, 64
      %14 = vsyncadd [#allocation3], %s13
      %s15 = sshll.u32 [#allocation2], 4
      %s16 = int_to_ptr.vmem [resolvable:$true] %s15
      %21 = dma.hbm_to_vmem [thread:$0]  %s0, 64, %s16, [#allocation3], 64, 64, 4
    $region5: #{tpu_custom_call.1} parent=1 // pred_fallthru
      _
    // Predicated region
    $region6: #{tpu_custom_call.1} parent=1 // pred_check
      _
    $region7: #{tpu_custom_call.1} parent=1 // pred_check_branch
      %23 = sbr.rel (0) target = $region9
    $region8: #{tpu_custom_call.1} parent=1 // pred_region
      %s25 = ssub.s32 128, 64
      %26 = vsyncadd [#allocation6], %s25
      %s27 = sshll.u32 [#allocation5], 4
      %s28 = int_to_ptr.vmem [resolvable:$true] %s27
      %33 = dma.hbm_to_vmem [thread:$0]  %s1, 64, %s28, [#allocation6], 64, 64, 4
    $region9: #{tpu_custom_call.1} parent=1 // pred_fallthru
      _
    // Predicated region
    $region10: #{tpu_custom_call.1} parent=1 // pred_check
      _
    $region11: #{tpu_custom_call.1} parent=1 // pred_check_branch
      %35 = sbr.rel (0) target = $region13
    $region12: #{tpu_custom_call.1} parent=1 // pred_region
      %36 = dma.done [#allocation3], 128
    $region13: #{tpu_custom_call.1} parent=1 // pred_fallthru
      _
    // Predicated region
    $region14: #{tpu_custom_call.1} parent=1 // pred_check
      _
    $region15: #{tpu_custom_call.1} parent=1 // pred_check_branch
      %38 = sbr.rel (0) target = $region17
    $region16: #{tpu_custom_call.1} parent=1 // pred_region
      %39 = dma.done [#allocation6], 128
    $region17: #{tpu_custom_call.1} parent=1 // pred_fallthru
      _
    %v40 = vlaneseq
    %v41 = vshrl.u32 %v40, 7
    %v42 = vlaneseq
    %v43 = vand.u32 %v42, 127
    %s44 = smul.u32 0, 8
    %v45 = vstv %s44
    %v46 = vadd.s32 %v45, %v41
    %v47 = vmul.u32 %v46, 128
    %v48 = vadd.s32 %v47, %v43
    %vm49 = vcmp.lt.s32.totalorder %v48, 512
    %v50 = vld [vmem:[#allocation2] sm:$0xff]
    %v51 = vld [vmem:[#allocation5] sm:$0xff]
    %v52 = vsub.f32 1.0, %v50
    %v53 = vmax.f32 %v52, 0.0
    %v54 = vadd.f32 %v51, 1.0
    %v55 = vmax.f32 %v54, 0.0
    %v56 = vadd.f32 %v53, %v55
    %v57 = vsel %vm49, %v56, 0.0
    %v58 = vadd.f32 %v57, 0.0
    %59 = vst [vmem:[#allocation7] sm:$0xff] %v58
    // Predicated region
    $region18: #{tpu_custom_call.1} parent=1 // pred_check
      _
    $region19: #{tpu_custom_call.1} parent=1 // pred_check_branch
      %61 = sbr.rel (0) target = $region21
    $region20: #{tpu_custom_call.1} parent=1 // pred_region
      %s63 = ssub.s32 128, 128
      %64 = vsyncadd [#allocation4], %s63
      %s66 = sshll.u32 [#allocation7], 4
      %s67 = int_to_ptr.vmem [resolvable:$true] %s66
      %69 = dma.vmem_to_hbm [thread:$0]  %s67, 128, %s2, [#allocation4]
    $region21: #{tpu_custom_call.1} parent=1 // pred_fallthru
      _
    // Predicated region
    $region22: #{tpu_custom_call.1} parent=1 // pred_check
      _
    $region23: #{tpu_custom_call.1} parent=1 // pred_check_branch
      %71 = sbr.rel (0) target = $region25
    $region24: #{tpu_custom_call.1} parent=1 // pred_region
      %72 = dma.done [#allocation4], 128
    $region25: #{tpu_custom_call.1} parent=1 // pred_fallthru
      _
    %73 = vsyncpa [#allocation3], 1
    %74 = vsyncpa [#allocation6], 1
    %75 = vsyncpa [#allocation4], 1

</llo_original>
